<compile_context>
chip_gen: v5e
topology: v5e:2x2
jax: 0.10.0
libtpu: 0.0.40
codegen_flags: <defaults>
</compile_context>

<pallas_src>
import functools
import math

import jax
import jax.numpy as jnp
from jax.experimental import pallas as pl
from jax.experimental.pallas import tpu as pltpu


def _mha_kernel(xq_ref, xk_ref, xv_ref,
                wq_ref, wk_ref, wv_ref, wo_ref,
                bq_ref, bk_ref, bv_ref, bo_ref,
                out_ref, attn_ref,
                k_scratch, v_scratch,
                *, num_heads, head_dim):
    # Block shapes for one (batch, q-tile) grid step:
    #   xq_ref   : (1, TQ, H) f32
    #   xk/xv    : (1, S,  H) f32  (index map constant in qi -> fetched once per batch)
    #   w*_ref   : (H, H)  bf16    (pre-transposed to (in, out); wq pre-scaled)
    #   b*_ref   : (1, H)  f32     (bq pre-scaled by 1/sqrt(head_dim))
    #   out_ref  : (1, TQ, H) f32
    #   attn_ref : (1, num_heads, TQ, S) f32
    #   k/v_scratch : (S, H) bf16, persist across q-tiles of a batch element.
    qi = pl.program_id(1)

    # --- K/V projection: once per batch element, reused for every q-tile. ---
    @pl.when(qi == 0)
    def _():
        xk = xk_ref[0].astype(jnp.bfloat16)                 # (S, H)
        xv = xv_ref[0].astype(jnp.bfloat16)
        k = jnp.dot(xk, wk_ref[...], preferred_element_type=jnp.float32) + bk_ref[0]
        v = jnp.dot(xv, wv_ref[...], preferred_element_type=jnp.float32) + bv_ref[0]
        k_scratch[...] = k.astype(jnp.bfloat16)
        v_scratch[...] = v.astype(jnp.bfloat16)

    # --- Q projection for this q-tile (scale folded into wq/bq upstream). ---
    xq = xq_ref[0].astype(jnp.bfloat16)                     # (TQ, H)
    q = (jnp.dot(xq, wq_ref[...], preferred_element_type=jnp.float32)
         + bq_ref[0]).astype(jnp.bfloat16)                  # (TQ, H)

    k_all = k_scratch[...]                                   # (S, H) bf16
    v_all = v_scratch[...]                                   # (S, H) bf16

    # --- Per-head attention: static unroll, pure 2-D MXU matmuls. -------------
    ctx_parts = []
    for h in range(num_heads):
        lo = h * head_dim
        q_h = q[:, lo:lo + head_dim]                         # (TQ, hd)
        k_h = k_all[:, lo:lo + head_dim]                     # (S,  hd)
        v_h = v_all[:, lo:lo + head_dim]                     # (S,  hd)

        # scores[q, k] = sum_d q_h[q, d] * k_h[k, d]   (scale already folded in)
        scores = jax.lax.dot_general(
            q_h, k_h, (((1,), (1,)), ((), ())),
            preferred_element_type=jnp.float32)              # (TQ, S) f32

        m = jnp.max(scores, axis=-1, keepdims=True)
        e = jnp.exp(scores - m)
        denom = jnp.sum(e, axis=-1, keepdims=True)
        attn_h = e * pl.reciprocal(denom, approx=True)       # (TQ, S)

        # TODO(synk): dropout on the attention weights is identity (eval mode)
        # and the optional `mask` argument of the PyTorch forward is not
        # implemented.

        attn_ref[0, h] = attn_h.astype(attn_ref.dtype)

        ctx_parts.append(
            jnp.dot(attn_h.astype(jnp.bfloat16), v_h,
                    preferred_element_type=jnp.float32))     # (TQ, hd)

    ctx = jnp.concatenate(ctx_parts, axis=-1).astype(jnp.bfloat16)   # (TQ, H)

    # --- Output projection. ---------------------------------------------------
    out = jnp.dot(ctx, wo_ref[...], preferred_element_type=jnp.float32) + bo_ref[0]
    out_ref[0] = out.astype(out_ref.dtype)


@functools.partial(jax.jit, static_argnames=("num_heads",))
def multi_head_attention(query, key, value, params, *, num_heads):
    """query/key/value: [B, S, H] float32. params: PyTorch-style weight dict."""
    B, S, H = query.shape
    assert H % num_heads == 0
    head_dim = H // num_heads

    scale = 1.0 / math.sqrt(head_dim)

    # PyTorch Linear stores (out_features, in_features); transpose once here
    # (jitted glue). Cast weights to bf16 for the MXU and fold the attention
    # scale into the query projection so no O(S^2) scaling is done in-kernel.
    wq = (params['wq'].T * scale).astype(jnp.bfloat16)
    wk = params['wk'].T.astype(jnp.bfloat16)
    wv = params['wv'].T.astype(jnp.bfloat16)
    wo = params['wo'].T.astype(jnp.bfloat16)
    bq = (params['bq'] * scale).reshape(1, H).astype(jnp.float32)
    bk = params['bk'].reshape(1, H).astype(jnp.float32)
    bv = params['bv'].reshape(1, H).astype(jnp.float32)
    bo = params['bo'].reshape(1, H).astype(jnp.float32)

    # q-tile: bounds live VMEM state to O(num_heads * TQ * S) per step.
    TQ = S if S <= 128 else 128
    assert S % TQ == 0, "sequence length must be divisible by the q-tile size"
    QT = S // TQ

    xq_spec = pl.BlockSpec((1, TQ, H), lambda b, qi: (b, qi, 0))
    xkv_spec = pl.BlockSpec((1, S, H), lambda b, qi: (b, 0, 0))
    w_spec = pl.BlockSpec((H, H), lambda b, qi: (0, 0))
    b_spec = pl.BlockSpec((1, H), lambda b, qi: (0, 0))

    kernel = functools.partial(_mha_kernel, num_heads=num_heads, head_dim=head_dim)

    out, attn = pl.pallas_call(
        kernel,
        out_shape=(
            jax.ShapeDtypeStruct((B, S, H), jnp.float32),
            jax.ShapeDtypeStruct((B, num_heads, S, S), jnp.float32),
        ),
        grid_spec=pltpu.PrefetchScalarGridSpec(
            num_scalar_prefetch=0,
            grid=(B, QT),
            in_specs=[xq_spec, xkv_spec, xkv_spec,
                      w_spec, w_spec, w_spec, w_spec,
                      b_spec, b_spec, b_spec, b_spec],
            out_specs=[
                pl.BlockSpec((1, TQ, H), lambda b, qi: (b, qi, 0)),
                pl.BlockSpec((1, num_heads, TQ, S), lambda b, qi: (b, 0, qi, 0)),
            ],
            scratch_shapes=[
                pltpu.VMEM((S, H), jnp.bfloat16),   # projected K (all heads)
                pltpu.VMEM((S, H), jnp.bfloat16),   # projected V (all heads)
            ],
        ),
        compiler_params=pltpu.CompilerParams(
            dimension_semantics=("parallel", "arbitrary"),
        ),
    )(query, key, value, wq, wk, wv, wo, bq, bk, bv, bo)
    return out, attn


def _init_params(key, hidden_dim):
    # Deterministic init mimicking nn.Linear's uniform(-1/sqrt(fan_in), ...).
    bound = 1.0 / math.sqrt(hidden_dim)
    keys = jax.random.split(key, 8)

    def u(k, shape):
        return jax.random.uniform(k, shape, jnp.float32, -bound, bound)

    return {
        'wq': u(keys[0], (hidden_dim, hidden_dim)), 'bq': u(keys[1], (hidden_dim,)),
        'wk': u(keys[2], (hidden_dim, hidden_dim)), 'bk': u(keys[3], (hidden_dim,)),
        'wv': u(keys[4], (hidden_dim, hidden_dim)), 'bv': u(keys[5], (hidden_dim,)),
        'wo': u(keys[6], (hidden_dim, hidden_dim)), 'bo': u(keys[7], (hidden_dim,)),
    }


def _reference(query, key, value, params, *, num_heads):
    # Pure-JAX fp32 reference matching the PyTorch forward (eval mode, no mask).
    B, S, H = query.shape
    hd = H // num_heads

    def lin(x, w, b):
        return jnp.einsum('bsh,oh->bso', x, w) + b

    Q = lin(query, params['wq'], params['bq']).reshape(B, S, num_heads, hd).transpose(0, 2, 1, 3)
    K = lin(key, params['wk'], params['bk']).reshape(B, S, num_heads, hd).transpose(0, 2, 1, 3)
    V = lin(value, params['wv'], params['bv']).reshape(B, S, num_heads, hd).transpose(0, 2, 1, 3)
    scores = jnp.einsum('bhqd,bhkd->bhqk', Q, K) / math.sqrt(hd)
    attn = jax.nn.softmax(scores, axis=-1)
    ctx = jnp.einsum('bhqk,bhkd->bhqd', attn, V)
    ctx = ctx.transpose(0, 2, 1, 3).reshape(B, S, H)
    out = lin(ctx, params['wo'], params['bo'])
    return out, attn


if __name__ == "__main__":
    B, S, H = 2, 8, 32
    num_heads = 4

    root = jax.random.PRNGKey(0)
    kq, kk, kv, kp = jax.random.split(root, 4)
    query = jax.random.normal(kq, (B, S, H), jnp.float32)
    key = jax.random.normal(kk, (B, S, H), jnp.float32)
    value = jax.random.normal(kv, (B, S, H), jnp.float32)
    params = _init_params(kp, H)

    out, attn = multi_head_attention(query, key, value, params, num_heads=num_heads)
    jax.block_until_ready((out, attn))

    ref_out, ref_attn = _reference(query, key, value, params, num_heads=num_heads)
    # bf16 matmuls + approximate reciprocal -> loosened tolerances.
    assert jnp.allclose(out, ref_out, atol=3e-2, rtol=3e-2), "output mismatch"
    assert jnp.allclose(attn, ref_attn, atol=3e-2, rtol=3e-2), "attention mismatch"

    print("KERNEL_OK")
</pallas_src>

<mosaic_0001>
module attributes {stable_mosaic.version = 11 : i64} {
  func.func @_mha_kernel(%arg0: i32, %arg1: i32, %arg2: memref<1x8x32xf32, #tpu.memory_space<vmem>>, %arg3: memref<1x8x32xf32, #tpu.memory_space<vmem>>, %arg4: memref<1x8x32xf32, #tpu.memory_space<vmem>>, %arg5: memref<32x32xbf16, #tpu.memory_space<vmem>>, %arg6: memref<32x32xbf16, #tpu.memory_space<vmem>>, %arg7: memref<32x32xbf16, #tpu.memory_space<vmem>>, %arg8: memref<32x32xbf16, #tpu.memory_space<vmem>>, %arg9: memref<1x32xf32, #tpu.memory_space<vmem>>, %arg10: memref<1x32xf32, #tpu.memory_space<vmem>>, %arg11: memref<1x32xf32, #tpu.memory_space<vmem>>, %arg12: memref<1x32xf32, #tpu.memory_space<vmem>>, %arg13: memref<1x8x32xf32, #tpu.memory_space<vmem>>, %arg14: memref<1x4x8x8xf32, #tpu.memory_space<vmem>>, %arg15: memref<8x32xbf16, #tpu.memory_space<vmem>>, %arg16: memref<8x32xbf16, #tpu.memory_space<vmem>>) attributes {dimension_semantics = [#tpu.dimension_semantics<parallel>, #tpu.dimension_semantics<arbitrary>], iteration_bounds = array<i64: 2, 1>, scalar_prefetch = 0 : i64, scratch_operands = 2 : i64, tpu.core_type = #tpu.core_type<tc>, window_params = [{transform_indices = @transform_0, window_bounds = array<i64: 1, 8, 32>}, {transform_indices = @transform_1, window_bounds = array<i64: 1, 8, 32>}, {transform_indices = @transform_2, window_bounds = array<i64: 1, 8, 32>}, {pipeline_mode = #tpu.pipeline_mode<synchronous>, transform_indices = @transform_3, window_bounds = array<i64: 32, 32>}, {pipeline_mode = #tpu.pipeline_mode<synchronous>, transform_indices = @transform_4, window_bounds = array<i64: 32, 32>}, {pipeline_mode = #tpu.pipeline_mode<synchronous>, transform_indices = @transform_5, window_bounds = array<i64: 32, 32>}, {pipeline_mode = #tpu.pipeline_mode<synchronous>, transform_indices = @transform_6, window_bounds = array<i64: 32, 32>}, {pipeline_mode = #tpu.pipeline_mode<synchronous>, transform_indices = @transform_7, window_bounds = array<i64: 1, 32>}, {pipeline_mode = #tpu.pipeline_mode<synchronous>, transform_indices = @transform_8, window_bounds = array<i64: 1, 32>}, {pipeline_mode = #tpu.pipeline_mode<synchronous>, transform_indices = @transform_9, window_bounds = array<i64: 1, 32>}, {pipeline_mode = #tpu.pipeline_mode<synchronous>, transform_indices = @transform_10, window_bounds = array<i64: 1, 32>}, {transform_indices = @transform_11, window_bounds = array<i64: 1, 8, 32>}, {transform_indices = @transform_12, window_bounds = array<i64: 1, 4, 8, 8>}]} {
    %c0_i32 = arith.constant 0 : i32
    %0 = arith.cmpi eq, %arg1, %c0_i32 : i32
    %1 = arith.extui %0 : i1 to i32
    %c0_i32_0 = arith.constant 0 : i32
    %2 = arith.cmpi ne, %1, %c0_i32_0 : i32
    scf.if %2 {
      %c0_48 = arith.constant 0 : index
      %c0_49 = arith.constant 0 : index
      %c0_50 = arith.constant 0 : index
      %104 = vector.load %arg3[%c0_48, %c0_49, %c0_50] : memref<1x8x32xf32, #tpu.memory_space<vmem>>, vector<1x8x32xf32>
      %105 = vector.shape_cast %104 : vector<1x8x32xf32> to vector<8x32xf32>
      %106 = arith.truncf %105 : vector<8x32xf32> to vector<8x32xbf16>
      %c0_51 = arith.constant 0 : index
      %c0_52 = arith.constant 0 : index
      %c0_53 = arith.constant 0 : index
      %107 = vector.load %arg4[%c0_51, %c0_52, %c0_53] : memref<1x8x32xf32, #tpu.memory_space<vmem>>, vector<1x8x32xf32>
      %108 = vector.shape_cast %107 : vector<1x8x32xf32> to vector<8x32xf32>
      %109 = arith.truncf %108 : vector<8x32xf32> to vector<8x32xbf16>
      %c0_54 = arith.constant 0 : index
      %c0_55 = arith.constant 0 : index
      %110 = vector.load %arg6[%c0_54, %c0_55] : memref<32x32xbf16, #tpu.memory_space<vmem>>, vector<32x32xbf16>
      %cst_56 = arith.constant dense<0.000000e+00> : vector<8x32xf32>
      %111 = tpu.matmul %106, %110, %cst_56 {dimension_numbers = #tpu.dot_dimension_numbers<[1], [0], [0], [1], [0, 0, 1, 1], [], []>} : vector<8x32xbf16>, vector<32x32xbf16>, vector<8x32xf32> -> vector<8x32xf32>
      %c0_57 = arith.constant 0 : index
      %c0_58 = arith.constant 0 : index
      %112 = vector.load %arg10[%c0_57, %c0_58] : memref<1x32xf32, #tpu.memory_space<vmem>>, vector<1x32xf32>
      %113 = vector.shape_cast %112 : vector<1x32xf32> to vector<32xf32>
      %114 = vector.shape_cast %113 : vector<32xf32> to vector<1x32xf32>
      %115 = vector.broadcast %114 : vector<1x32xf32> to vector<8x32xf32>
      %116 = arith.addf %111, %115 : vector<8x32xf32>
      %c0_59 = arith.constant 0 : index
      %c0_60 = arith.constant 0 : index
      %117 = vector.load %arg7[%c0_59, %c0_60] : memref<32x32xbf16, #tpu.memory_space<vmem>>, vector<32x32xbf16>
      %cst_61 = arith.constant dense<0.000000e+00> : vector<8x32xf32>
      %118 = tpu.matmul %109, %117, %cst_61 {dimension_numbers = #tpu.dot_dimension_numbers<[1], [0], [0], [1], [0, 0, 1, 1], [], []>} : vector<8x32xbf16>, vector<32x32xbf16>, vector<8x32xf32> -> vector<8x32xf32>
      %c0_62 = arith.constant 0 : index
      %c0_63 = arith.constant 0 : index
      %119 = vector.load %arg11[%c0_62, %c0_63] : memref<1x32xf32, #tpu.memory_space<vmem>>, vector<1x32xf32>
      %120 = vector.shape_cast %119 : vector<1x32xf32> to vector<32xf32>
      %121 = vector.shape_cast %120 : vector<32xf32> to vector<1x32xf32>
      %122 = vector.broadcast %121 : vector<1x32xf32> to vector<8x32xf32>
      %123 = arith.addf %118, %122 : vector<8x32xf32>
      %124 = arith.truncf %116 : vector<8x32xf32> to vector<8x32xbf16>
      %c0_64 = arith.constant 0 : index
      %c0_65 = arith.constant 0 : index
      %125 = vector.load %arg15[%c0_64, %c0_65] : memref<8x32xbf16, #tpu.memory_space<vmem>>, vector<8x32xbf16>
      tpu.vector_store %arg15[%c0_64, %c0_65], %124 {strides = array<i32>} : memref<8x32xbf16, #tpu.memory_space<vmem>>, vector<8x32xbf16>,
      %126 = arith.truncf %123 : vector<8x32xf32> to vector<8x32xbf16>
      %c0_66 = arith.constant 0 : index
      %c0_67 = arith.constant 0 : index
      %127 = vector.load %arg16[%c0_66, %c0_67] : memref<8x32xbf16, #tpu.memory_space<vmem>>, vector<8x32xbf16>
      tpu.vector_store %arg16[%c0_66, %c0_67], %126 {strides = array<i32>} : memref<8x32xbf16, #tpu.memory_space<vmem>>, vector<8x32xbf16>,
    } else {
    }
    %c0 = arith.constant 0 : index
    %c0_1 = arith.constant 0 : index
    %c0_2 = arith.constant 0 : index
    %3 = vector.load %arg2[%c0, %c0_1, %c0_2] : memref<1x8x32xf32, #tpu.memory_space<vmem>>, vector<1x8x32xf32>
    %4 = vector.shape_cast %3 : vector<1x8x32xf32> to vector<8x32xf32>
    %5 = arith.truncf %4 : vector<8x32xf32> to vector<8x32xbf16>
    %c0_3 = arith.constant 0 : index
    %c0_4 = arith.constant 0 : index
    %6 = vector.load %arg5[%c0_3, %c0_4] : memref<32x32xbf16, #tpu.memory_space<vmem>>, vector<32x32xbf16>
    %cst = arith.constant dense<0.000000e+00> : vector<8x32xf32>
    %7 = tpu.matmul %5, %6, %cst {dimension_numbers = #tpu.dot_dimension_numbers<[1], [0], [0], [1], [0, 0, 1, 1], [], []>} : vector<8x32xbf16>, vector<32x32xbf16>, vector<8x32xf32> -> vector<8x32xf32>
    %c0_5 = arith.constant 0 : index
    %c0_6 = arith.constant 0 : index
    %8 = vector.load %arg9[%c0_5, %c0_6] : memref<1x32xf32, #tpu.memory_space<vmem>>, vector<1x32xf32>
    %9 = vector.shape_cast %8 : vector<1x32xf32> to vector<32xf32>
    %10 = vector.shape_cast %9 : vector<32xf32> to vector<1x32xf32>
    %11 = vector.broadcast %10 : vector<1x32xf32> to vector<8x32xf32>
    %12 = arith.addf %7, %11 : vector<8x32xf32>
    %13 = arith.truncf %12 : vector<8x32xf32> to vector<8x32xbf16>
    %c0_7 = arith.constant 0 : index
    %c0_8 = arith.constant 0 : index
    %14 = vector.load %arg15[%c0_7, %c0_8] : memref<8x32xbf16, #tpu.memory_space<vmem>>, vector<8x32xbf16>
    %c0_9 = arith.constant 0 : index
    %c0_10 = arith.constant 0 : index
    %15 = vector.load %arg16[%c0_9, %c0_10] : memref<8x32xbf16, #tpu.memory_space<vmem>>, vector<8x32xbf16>
    %16 = vector.extract_strided_slice %13 {offsets = [0, 0], sizes = [8, 8], strides = [1, 1]} : vector<8x32xbf16> to vector<8x8xbf16>
    %17 = vector.extract_strided_slice %14 {offsets = [0, 0], sizes = [8, 8], strides = [1, 1]} : vector<8x32xbf16> to vector<8x8xbf16>
    %18 = vector.extract_strided_slice %15 {offsets = [0, 0], sizes = [8, 8], strides = [1, 1]} : vector<8x32xbf16> to vector<8x8xbf16>
    %cst_11 = arith.constant dense<0.000000e+00> : vector<8x8xf32>
    %19 = tpu.matmul %16, %17, %cst_11 {dimension_numbers = #tpu.dot_dimension_numbers<[1], [1], [0], [0], [0, 0, 1, 0], [], []>} : vector<8x8xbf16>, vector<8x8xbf16>, vector<8x8xf32> -> vector<8x8xf32>
    %cst_12 = arith.constant dense<0xFF800000> : vector<8xf32>
    %20 = vector.multi_reduction <maximumf>, %19, %cst_12 [1] : vector<8x8xf32> to vector<8xf32>
    %21 = vector.shape_cast %20 : vector<8xf32> to vector<8x1xf32>
    %22 = vector.broadcast %21 : vector<8x1xf32> to vector<8x8xf32>
    %23 = arith.subf %19, %22 : vector<8x8xf32>
    %24 = math.exp %23 : vector<8x8xf32>
    %cst_13 = arith.constant dense<0.000000e+00> : vector<8xf32>
    %25 = vector.multi_reduction <add>, %24, %cst_13 [1] : vector<8x8xf32> to vector<8xf32>
    %26 = vector.shape_cast %25 : vector<8xf32> to vector<8x1xf32>
    %27 = tpu.reciprocal %26 {approx = true} : vector<8x1xf32> -> vector<8x1xf32>
    %28 = vector.broadcast %27 : vector<8x1xf32> to vector<8x8xf32>
    %29 = arith.mulf %24, %28 : vector<8x8xf32>
    %c0_14 = arith.constant 0 : index
    %c0_15 = arith.constant 0 : index
    %c0_16 = arith.constant 0 : index
    %c0_17 = arith.constant 0 : index
    %30 = vector.load %arg14[%c0_14, %c0_15, %c0_16, %c0_17] : memref<1x4x8x8xf32, #tpu.memory_space<vmem>>, vector<1x1x8x8xf32>
    %31 = vector.shape_cast %30 : vector<1x1x8x8xf32> to vector<8x8xf32>
    %32 = vector.shape_cast %29 : vector<8x8xf32> to vector<1x1x8x8xf32>
    tpu.vector_store %arg14[%c0_14, %c0_15, %c0_16, %c0_17], %32 {strides = array<i32>} : memref<1x4x8x8xf32, #tpu.memory_space<vmem>>, vector<1x1x8x8xf32>,
    %33 = arith.truncf %29 : vector<8x8xf32> to vector<8x8xbf16>
    %cst_18 = arith.constant dense<0.000000e+00> : vector<8x8xf32>
    %34 = tpu.matmul %33, %18, %cst_18 {dimension_numbers = #tpu.dot_dimension_numbers<[1], [0], [0], [1], [0, 0, 1, 1], [], []>} : vector<8x8xbf16>, vector<8x8xbf16>, vector<8x8xf32> -> vector<8x8xf32>
    %35 = vector.extract_strided_slice %13 {offsets = [0, 8], sizes = [8, 8], strides = [1, 1]} : vector<8x32xbf16> to vector<8x8xbf16>
    %36 = vector.extract_strided_slice %14 {offsets = [0, 8], sizes = [8, 8], strides = [1, 1]} : vector<8x32xbf16> to vector<8x8xbf16>
    %37 = vector.extract_strided_slice %15 {offsets = [0, 8], sizes = [8, 8], strides = [1, 1]} : vector<8x32xbf16> to vector<8x8xbf16>
    %cst_19 = arith.constant dense<0.000000e+00> : vector<8x8xf32>
    %38 = tpu.matmul %35, %36, %cst_19 {dimension_numbers = #tpu.dot_dimension_numbers<[1], [1], [0], [0], [0, 0, 1, 0], [], []>} : vector<8x8xbf16>, vector<8x8xbf16>, vector<8x8xf32> -> vector<8x8xf32>
    %cst_20 = arith.constant dense<0xFF800000> : vector<8xf32>
    %39 = vector.multi_reduction <maximumf>, %38, %cst_20 [1] : vector<8x8xf32> to vector<8xf32>
    %40 = vector.shape_cast %39 : vector<8xf32> to vector<8x1xf32>
    %41 = vector.broadcast %40 : vector<8x1xf32> to vector<8x8xf32>
    %42 = arith.subf %38, %41 : vector<8x8xf32>
    %43 = math.exp %42 : vector<8x8xf32>
    %cst_21 = arith.constant dense<0.000000e+00> : vector<8xf32>
    %44 = vector.multi_reduction <add>, %43, %cst_21 [1] : vector<8x8xf32> to vector<8xf32>
    %45 = vector.shape_cast %44 : vector<8xf32> to vector<8x1xf32>
    %46 = tpu.reciprocal %45 {approx = true} : vector<8x1xf32> -> vector<8x1xf32>
    %47 = vector.broadcast %46 : vector<8x1xf32> to vector<8x8xf32>
    %48 = arith.mulf %43, %47 : vector<8x8xf32>
    %c0_22 = arith.constant 0 : index
    %c1 = arith.constant 1 : index
    %c0_23 = arith.constant 0 : index
    %c0_24 = arith.constant 0 : index
    %49 = vector.load %arg14[%c0_22, %c1, %c0_23, %c0_24] : memref<1x4x8x8xf32, #tpu.memory_space<vmem>>, vector<1x1x8x8xf32>
    %50 = vector.shape_cast %49 : vector<1x1x8x8xf32> to vector<8x8xf32>
    %51 = vector.shape_cast %48 : vector<8x8xf32> to vector<1x1x8x8xf32>
    tpu.vector_store %arg14[%c0_22, %c1, %c0_23, %c0_24], %51 {strides = array<i32>} : memref<1x4x8x8xf32, #tpu.memory_space<vmem>>, vector<1x1x8x8xf32>,
    %52 = arith.truncf %48 : vector<8x8xf32> to vector<8x8xbf16>
    %cst_25 = arith.constant dense<0.000000e+00> : vector<8x8xf32>
    %53 = tpu.matmul %52, %37, %cst_25 {dimension_numbers = #tpu.dot_dimension_numbers<[1], [0], [0], [1], [0, 0, 1, 1], [], []>} : vector<8x8xbf16>, vector<8x8xbf16>, vector<8x8xf32> -> vector<8x8xf32>
    %54 = vector.extract_strided_slice %13 {offsets = [0, 16], sizes = [8, 8], strides = [1, 1]} : vector<8x32xbf16> to vector<8x8xbf16>
    %55 = vector.extract_strided_slice %14 {offsets = [0, 16], sizes = [8, 8], strides = [1, 1]} : vector<8x32xbf16> to vector<8x8xbf16>
    %56 = vector.extract_strided_slice %15 {offsets = [0, 16], sizes = [8, 8], strides = [1, 1]} : vector<8x32xbf16> to vector<8x8xbf16>
    %cst_26 = arith.constant dense<0.000000e+00> : vector<8x8xf32>
    %57 = tpu.matmul %54, %55, %cst_26 {dimension_numbers = #tpu.dot_dimension_numbers<[1], [1], [0], [0], [0, 0, 1, 0], [], []>} : vector<8x8xbf16>, vector<8x8xbf16>, vector<8x8xf32> -> vector<8x8xf32>
    %cst_27 = arith.constant dense<0xFF800000> : vector<8xf32>
    %58 = vector.multi_reduction <maximumf>, %57, %cst_27 [1] : vector<8x8xf32> to vector<8xf32>
    %59 = vector.shape_cast %58 : vector<8xf32> to vector<8x1xf32>
    %60 = vector.broadcast %59 : vector<8x1xf32> to vector<8x8xf32>
    %61 = arith.subf %57, %60 : vector<8x8xf32>
    %62 = math.exp %61 : vector<8x8xf32>
    %cst_28 = arith.constant dense<0.000000e+00> : vector<8xf32>
    %63 = vector.multi_reduction <add>, %62, %cst_28 [1] : vector<8x8xf32> to vector<8xf32>
    %64 = vector.shape_cast %63 : vector<8xf32> to vector<8x1xf32>
    %65 = tpu.reciprocal %64 {approx = true} : vector<8x1xf32> -> vector<8x1xf32>
    %66 = vector.broadcast %65 : vector<8x1xf32> to vector<8x8xf32>
    %67 = arith.mulf %62, %66 : vector<8x8xf32>
    %c0_29 = arith.constant 0 : index
    %c2 = arith.constant 2 : index
    %c0_30 = arith.constant 0 : index
    %c0_31 = arith.constant 0 : index
    %68 = vector.load %arg14[%c0_29, %c2, %c0_30, %c0_31] : memref<1x4x8x8xf32, #tpu.memory_space<vmem>>, vector<1x1x8x8xf32>
    %69 = vector.shape_cast %68 : vector<1x1x8x8xf32> to vector<8x8xf32>
    %70 = vector.shape_cast %67 : vector<8x8xf32> to vector<1x1x8x8xf32>
    tpu.vector_store %arg14[%c0_29, %c2, %c0_30, %c0_31], %70 {strides = array<i32>} : memref<1x4x8x8xf32, #tpu.memory_space<vmem>>, vector<1x1x8x8xf32>,
    %71 = arith.truncf %67 : vector<8x8xf32> to vector<8x8xbf16>
    %cst_32 = arith.constant dense<0.000000e+00> : vector<8x8xf32>
    %72 = tpu.matmul %71, %56, %cst_32 {dimension_numbers = #tpu.dot_dimension_numbers<[1], [0], [0], [1], [0, 0, 1, 1], [], []>} : vector<8x8xbf16>, vector<8x8xbf16>, vector<8x8xf32> -> vector<8x8xf32>
    %73 = vector.extract_strided_slice %13 {offsets = [0, 24], sizes = [8, 8], strides = [1, 1]} : vector<8x32xbf16> to vector<8x8xbf16>
    %74 = vector.extract_strided_slice %14 {offsets = [0, 24], sizes = [8, 8], strides = [1, 1]} : vector<8x32xbf16> to vector<8x8xbf16>
    %75 = vector.extract_strided_slice %15 {offsets = [0, 24], sizes = [8, 8], strides = [1, 1]} : vector<8x32xbf16> to vector<8x8xbf16>
    %cst_33 = arith.constant dense<0.000000e+00> : vector<8x8xf32>
    %76 = tpu.matmul %73, %74, %cst_33 {dimension_numbers = #tpu.dot_dimension_numbers<[1], [1], [0], [0], [0, 0, 1, 0], [], []>} : vector<8x8xbf16>, vector<8x8xbf16>, vector<8x8xf32> -> vector<8x8xf32>
    %cst_34 = arith.constant dense<0xFF800000> : vector<8xf32>
    %77 = vector.multi_reduction <maximumf>, %76, %cst_34 [1] : vector<8x8xf32> to vector<8xf32>
    %78 = vector.shape_cast %77 : vector<8xf32> to vector<8x1xf32>
    %79 = vector.broadcast %78 : vector<8x1xf32> to vector<8x8xf32>
    %80 = arith.subf %76, %79 : vector<8x8xf32>
    %81 = math.exp %80 : vector<8x8xf32>
    %cst_35 = arith.constant dense<0.000000e+00> : vector<8xf32>
    %82 = vector.multi_reduction <add>, %81, %cst_35 [1] : vector<8x8xf32> to vector<8xf32>
    %83 = vector.shape_cast %82 : vector<8xf32> to vector<8x1xf32>
    %84 = tpu.reciprocal %83 {approx = true} : vector<8x1xf32> -> vector<8x1xf32>
    %85 = vector.broadcast %84 : vector<8x1xf32> to vector<8x8xf32>
    %86 = arith.mulf %81, %85 : vector<8x8xf32>
    %c0_36 = arith.constant 0 : index
    %c3 = arith.constant 3 : index
    %c0_37 = arith.constant 0 : index
    %c0_38 = arith.constant 0 : index
    %87 = vector.load %arg14[%c0_36, %c3, %c0_37, %c0_38] : memref<1x4x8x8xf32, #tpu.memory_space<vmem>>, vector<1x1x8x8xf32>
    %88 = vector.shape_cast %87 : vector<1x1x8x8xf32> to vector<8x8xf32>
    %89 = vector.shape_cast %86 : vector<8x8xf32> to vector<1x1x8x8xf32>
    tpu.vector_store %arg14[%c0_36, %c3, %c0_37, %c0_38], %89 {strides = array<i32>} : memref<1x4x8x8xf32, #tpu.memory_space<vmem>>, vector<1x1x8x8xf32>,
    %90 = arith.truncf %86 : vector<8x8xf32> to vector<8x8xbf16>
    %cst_39 = arith.constant dense<0.000000e+00> : vector<8x8xf32>
    %91 = tpu.matmul %90, %75, %cst_39 {dimension_numbers = #tpu.dot_dimension_numbers<[1], [0], [0], [1], [0, 0, 1, 1], [], []>} : vector<8x8xbf16>, vector<8x8xbf16>, vector<8x8xf32> -> vector<8x8xf32>
    %92 = tpu.concatenate %34, %53, %72, %91 in 1 : vector<8x8xf32>, vector<8x8xf32>, vector<8x8xf32>, vector<8x8xf32> -> vector<8x32xf32>
    %93 = arith.truncf %92 : vector<8x32xf32> to vector<8x32xbf16>
    %c0_40 = arith.constant 0 : index
    %c0_41 = arith.constant 0 : index
    %94 = vector.load %arg8[%c0_40, %c0_41] : memref<32x32xbf16, #tpu.memory_space<vmem>>, vector<32x32xbf16>
    %cst_42 = arith.constant dense<0.000000e+00> : vector<8x32xf32>
    %95 = tpu.matmul %93, %94, %cst_42 {dimension_numbers = #tpu.dot_dimension_numbers<[1], [0], [0], [1], [0, 0, 1, 1], [], []>} : vector<8x32xbf16>, vector<32x32xbf16>, vector<8x32xf32> -> vector<8x32xf32>
    %c0_43 = arith.constant 0 : index
    %c0_44 = arith.constant 0 : index
    %96 = vector.load %arg12[%c0_43, %c0_44] : memref<1x32xf32, #tpu.memory_space<vmem>>, vector<1x32xf32>
    %97 = vector.shape_cast %96 : vector<1x32xf32> to vector<32xf32>
    %98 = vector.shape_cast %97 : vector<32xf32> to vector<1x32xf32>
    %99 = vector.broadcast %98 : vector<1x32xf32> to vector<8x32xf32>
    %100 = arith.addf %95, %99 : vector<8x32xf32>
    %c0_45 = arith.constant 0 : index
    %c0_46 = arith.constant 0 : index
    %c0_47 = arith.constant 0 : index
    %101 = vector.load %arg13[%c0_45, %c0_46, %c0_47] : memref<1x8x32xf32, #tpu.memory_space<vmem>>, vector<1x8x32xf32>
    %102 = vector.shape_cast %101 : vector<1x8x32xf32> to vector<8x32xf32>
    %103 = vector.shape_cast %100 : vector<8x32xf32> to vector<1x8x32xf32>
    tpu.vector_store %arg13[%c0_45, %c0_46, %c0_47], %103 {strides = array<i32>} : memref<1x8x32xf32, #tpu.memory_space<vmem>>, vector<1x8x32xf32>,
    return
  }
  func.func @transform_0(%arg0: i32, %arg1: i32) -> (i32, i32, i32) {
    %c0_i32 = arith.constant 0 : i32
    %c0_i32_0 = arith.constant 0 : i32
    return %arg0, %arg1, %c0_i32 : i32, i32, i32
  }
  func.func @transform_1(%arg0: i32, %arg1: i32) -> (i32, i32, i32) {
    %c0_i32 = arith.constant 0 : i32
    %c0_i32_0 = arith.constant 0 : i32
    %c0_i32_1 = arith.constant 0 : i32
    return %arg0, %c0_i32, %c0_i32_0 : i32, i32, i32
  }
  func.func @transform_2(%arg0: i32, %arg1: i32) -> (i32, i32, i32) {
    %c0_i32 = arith.constant 0 : i32
    %c0_i32_0 = arith.constant 0 : i32
    %c0_i32_1 = arith.constant 0 : i32
    return %arg0, %c0_i32, %c0_i32_0 : i32, i32, i32
  }
  func.func @transform_3(%arg0: i32, %arg1: i32) -> (i32, i32) {
    %c0_i32 = arith.constant 0 : i32
    %c0_i32_0 = arith.constant 0 : i32
    %c0_i32_1 = arith.constant 0 : i32
    return %c0_i32, %c0_i32_0 : i32, i32
  }
  func.func @transform_4(%arg0: i32, %arg1: i32) -> (i32, i32) {
    %c0_i32 = arith.constant 0 : i32
    %c0_i32_0 = arith.constant 0 : i32
    %c0_i32_1 = arith.constant 0 : i32
    return %c0_i32, %c0_i32_0 : i32, i32
  }
  func.func @transform_5(%arg0: i32, %arg1: i32) -> (i32, i32) {
    %c0_i32 = arith.constant 0 : i32
    %c0_i32_0 = arith.constant 0 : i32
    %c0_i32_1 = arith.constant 0 : i32
    return %c0_i32, %c0_i32_0 : i32, i32
  }
  func.func @transform_6(%arg0: i32, %arg1: i32) -> (i32, i32) {
    %c0_i32 = arith.constant 0 : i32
    %c0_i32_0 = arith.constant 0 : i32
    %c0_i32_1 = arith.constant 0 : i32
    return %c0_i32, %c0_i32_0 : i32, i32
  }
  func.func @transform_7(%arg0: i32, %arg1: i32) -> (i32, i32) {
    %c0_i32 = arith.constant 0 : i32
    %c0_i32_0 = arith.constant 0 : i32
    %c0_i32_1 = arith.constant 0 : i32
    return %c0_i32, %c0_i32_0 : i32, i32
  }
  func.func @transform_8(%arg0: i32, %arg1: i32) -> (i32, i32) {
    %c0_i32 = arith.constant 0 : i32
    %c0_i32_0 = arith.constant 0 : i32
    %c0_i32_1 = arith.constant 0 : i32
    return %c0_i32, %c0_i32_0 : i32, i32
  }
  func.func @transform_9(%arg0: i32, %arg1: i32) -> (i32, i32) {
    %c0_i32 = arith.constant 0 : i32
    %c0_i32_0 = arith.constant 0 : i32
    %c0_i32_1 = arith.constant 0 : i32
    return %c0_i32, %c0_i32_0 : i32, i32
  }
  func.func @transform_10(%arg0: i32, %arg1: i32) -> (i32, i32) {
    %c0_i32 = arith.constant 0 : i32
    %c0_i32_0 = arith.constant 0 : i32
    %c0_i32_1 = arith.constant 0 : i32
    return %c0_i32, %c0_i32_0 : i32, i32
  }
  func.func @transform_11(%arg0: i32, %arg1: i32) -> (i32, i32, i32) {
    %c0_i32 = arith.constant 0 : i32
    %c0_i32_0 = arith.constant 0 : i32
    return %arg0, %arg1, %c0_i32 : i32, i32, i32
  }
  func.func @transform_12(%arg0: i32, %arg1: i32) -> (i32, i32, i32, i32) {
    %c0_i32 = arith.constant 0 : i32
    %c0_i32_0 = arith.constant 0 : i32
    %c0_i32_1 = arith.constant 0 : i32
    return %arg0, %c0_i32, %arg1, %c0_i32_0 : i32, i32, i32, i32
  }
}

</mosaic_0001>

<llo_original>
// kernel: multi_head_attention.1
$region0: #{multi_head_attention.1}
  #allocation0 [shape = 'u32[]', space=smem, size = 0x4, offset = 0x4, fixed_abs, tag = 'smem constant byte address 0x4 - core index']
  #allocation1 [shape = 'u32[72,128]{1,0:T(1,128)}', space=vmem, size = 0x9000, scoped, tag = 'internal scratch']
  #allocation2 [shape = 'bf16[8,32]{1,0:T(8,128)(2,1)}', space=vmem, size = 0x800, scoped, tag = 'scratch operand']
  #allocation3 [shape = 'bf16[8,32]{1,0:T(8,128)(2,1)}', space=vmem, size = 0x800, scoped, tag = 'scratch operand']
  %s0 = inlined_call_operand.vmem [shape: f32[2,8,32], index: 0, kind: input, shape index: {}]
  %s1 = inlined_call_operand.vmem [shape: f32[2,8,32], index: 1, kind: input, shape index: {}]
  %s2 = inlined_call_operand.vmem [shape: f32[2,8,32], index: 2, kind: input, shape index: {}]
  %s3 = inlined_call_operand.vmem [shape: bf16[32,32], index: 3, kind: input, shape index: {}]
  %s4 = inlined_call_operand.vmem [shape: bf16[32,32], index: 4, kind: input, shape index: {}]
  %s5 = inlined_call_operand.vmem [shape: bf16[32,32], index: 5, kind: input, shape index: {}]
  %s6 = inlined_call_operand.vmem [shape: bf16[32,32], index: 6, kind: input, shape index: {}]
  %s7 = inlined_call_operand.vmem [shape: f32[1,32], index: 7, kind: input, shape index: {}]
  %s8 = inlined_call_operand.vmem [shape: f32[1,32], index: 8, kind: input, shape index: {}]
  %s9 = inlined_call_operand.vmem [shape: f32[1,32], index: 9, kind: input, shape index: {}]
  %s10 = inlined_call_operand.vmem [shape: f32[1,32], index: 10, kind: input, shape index: {}]
  %s11 = inlined_call_operand.hbm [shape: f32[2,8,32], index: 11, kind: output, shape index: {0}]
  %s12 = inlined_call_operand.hbm [shape: f32[2,4,8,8], index: 12, kind: output, shape index: {1}]
  %13 = xla_tuple %s11, %s12
  %s14 = sld [smem:[#allocation0]]
  $region89: #{multi_head_attention.1} parent=0
    _
  %s16 = ssub.s32 1, %s14
  %s17 = scalar_select 0, %s16, %s14
  $region1: #{multi_head_attention.1} parent=0
    #allocation4 [shape = 'u8[8192]{0}', space=vmem, size = 0x2000, scoped, tag = 'output window, operand 0']
    #allocation5 [shape = 's32[2]{0}', space=sflag, size = 0x8, scoped, tag = 'scoped memory for multi_head_attention.1']
    #allocation6 [shape = 'u8[32768]{0}', space=vmem, size = 0x8000, scoped, tag = 'output window, operand 1']
    #allocation7 [shape = 's32[2]{0}', space=sflag, size = 0x8, scoped, tag = 'scoped memory for multi_head_attention.1']
    %18 = vsyncpa [#allocation5], 0
    %s19 = scalar_lea.sflag [#allocation5], 1
    %20 = vsyncpa %s19, 0
    %21 = vsyncpa [#allocation7], 0
    %s22 = scalar_lea.sflag [#allocation7], 1
    %23 = vsyncpa %s22, 0
    loop: start=0, step=1, limit=4
    $region2: #{multi_head_attention.1} parent=1 // loop_pre_header
      _
    $region3: #{multi_head_attention.1} parent=1 // loop_header
      %s25 = sphi 0, %s29
      %p26 = scmp.ge.s32.totalorder %s25, 4
      %s32 = sphi 0, %s44
      %s33 = sphi 0, %s40
      %s34 = sphi 0, %s32
      %s35 = sphi 0, %s33
      %s36 = sphi 0, %s34
      %s37 = sphi 0, %s35
      %s49 = sphi 0, %s51
      %s52 = sphi 0, %s49
      %s53 = sphi 0, %s52
      %s69 = sphi 0, %s53
      %s75 = sphi 0, %s77
      %s78 = sphi 0, %s75
      %s79 = sphi 0, %s78
      %s95 = sphi 0, %s79
      %s101 = sphi 0, %s103
      %s104 = sphi 0, %s101
      %s105 = sphi 0, %s104
      %s121 = sphi 0, %s105
      %s125 = sphi 0, %s125
      %s127 = sphi 0, %s125
      %s128 = sphi 0, %s127
      %s142 = sphi 0, %s128
      %s146 = sphi 0, %s146
      %s148 = sphi 0, %s146
      %s149 = sphi 0, %s148
      %s163 = sphi 0, %s149
      %s167 = sphi 0, %s167
      %s169 = sphi 0, %s167
      %s170 = sphi 0, %s169
      %s184 = sphi 0, %s170
      %s188 = sphi 0, %s188
      %s190 = sphi 0, %s188
      %s191 = sphi 0, %s190
      %s205 = sphi 0, %s191
      %s209 = sphi 0, %s209
      %s211 = sphi 0, %s209
      %s212 = sphi 0, %s211
      %s226 = sphi 0, %s212
      %s230 = sphi 0, %s230
      %s232 = sphi 0, %s230
      %s233 = sphi 0, %s232
      %s247 = sphi 0, %s233
      %s251 = sphi 0, %s251
      %s253 = sphi 0, %s251
      %s254 = sphi 0, %s253
      %s268 = sphi 0, %s254
      %s272 = sphi 0, %s272
      %s274 = sphi 0, %s272
      %s275 = sphi 0, %s274
      %s289 = sphi 0, %s275
      %s297 = sphi 0, %s299
      %s300 = sphi 0, %s297
      %s301 = sphi 0, %s300
      %s317 = sphi 0, %s301
      %s325 = sphi 0, %s327
      %s328 = sphi 0, %s325
      %s329 = sphi 0, %s328
      %s345 = sphi 0, %s329
    $region4: #{multi_head_attention.1} parent=1 // loop_header_branch
      %28 = sbr.rel (%p26) target = $region8
    $region5: #{multi_head_attention.1} parent=1 // loop_body
      %s30 = ssub.s32 %s25, 1
      %s31 = ssub.s32 %s25, 2
      %s38 = sadd.s32 1, %s33
      %p39 = scmp.ge.s32.totalorder %s38, 1
      %s40 = scalar_select %p39, 0, %s38
      %s41 = sadd.s32 1, %s32
      %s42 = scalar_select %p39, %s41, %s32
      %p43 = scmp.ge.s32.totalorder %s42, 2
      %s44 = scalar_select %p43, 0, %s42
      %s45 = ssub.s32 %s32, %s44
      %s46 = ssub.s32 %s33, %s40
      %s47 = sor.u32 %s45, %s46
      %p48 = scmp.eq.s32.totalorder %s47, 0
      %s50 = sadd.s32 %s49, 1
      %s51 = scalar_select %p48, %s49, %s50
      %p54 = pneg %p48
      %p55 = scmp.eq.s32.totalorder %s25, 1
      %p56 = por %p54, %p55
      %p57 = scmp.ne.s32.totalorder %s49, %s52
      %p58 = scmp.eq.s32.totalorder %s25, 0
      %p59 = por %p57, %p58
      %p60 = scmp.ne.s32.totalorder %s49, %s52
      %p61 = scmp.eq.s32.totalorder %s30, 1
      %p62 = por %p60, %p61
      %p63 = scmp.ne.s32.totalorder %s52, %s53
      %p64 = scmp.eq.s32.totalorder %s30, 0
      %p65 = por %p63, %p64
      %p66 = scmp.ne.s32.totalorder %s52, %s53
      %p67 = scmp.eq.s32.totalorder %s31, 1
      %p68 = por %p66, %p67
      %p70 = scmp.ne.s32.totalorder %s53, %s69
      %p71 = scmp.eq.s32.totalorder %s31, 0
      %p72 = por %p70, %p71
      %s73 = ssub.s32 %s32, %s44
      %p74 = scmp.eq.s32.totalorder %s73, 0
      %s76 = sadd.s32 %s75, 1
      %s77 = scalar_select %p74, %s75, %s76
      %p80 = pneg %p74
      %p81 = scmp.eq.s32.totalorder %s25, 1
      %p82 = por %p80, %p81
      %p83 = scmp.ne.s32.totalorder %s75, %s78
      %p84 = scmp.eq.s32.totalorder %s25, 0
      %p85 = por %p83, %p84
      %p86 = scmp.ne.s32.totalorder %s75, %s78
      %p87 = scmp.eq.s32.totalorder %s30, 1
      %p88 = por %p86, %p87
      %p89 = scmp.ne.s32.totalorder %s78, %s79
      %p90 = scmp.eq.s32.totalorder %s30, 0
      %p91 = por %p89, %p90
      %p92 = scmp.ne.s32.totalorder %s78, %s79
      %p93 = scmp.eq.s32.totalorder %s31, 1
      %p94 = por %p92, %p93
      %p96 = scmp.ne.s32.totalorder %s79, %s95
      %p97 = scmp.eq.s32.totalorder %s31, 0
      %p98 = por %p96, %p97
      %s99 = ssub.s32 %s32, %s44
      %p100 = scmp.eq.s32.totalorder %s99, 0
      %s102 = sadd.s32 %s101, 1
      %s103 = scalar_select %p100, %s101, %s102
      %p106 = pneg %p100
      %p107 = scmp.eq.s32.totalorder %s25, 1
      %p108 = por %p106, %p107
      %p109 = scmp.ne.s32.totalorder %s101, %s104
      %p110 = scmp.eq.s32.totalorder %s25, 0
      %p111 = por %p109, %p110
      %p112 = scmp.ne.s32.totalorder %s101, %s104
      %p113 = scmp.eq.s32.totalorder %s30, 1
      %p114 = por %p112, %p113
      %p115 = scmp.ne.s32.totalorder %s104, %s105
      %p116 = scmp.eq.s32.totalorder %s30, 0
      %p117 = por %p115, %p116
      %p118 = scmp.ne.s32.totalorder %s104, %s105
      %p119 = scmp.eq.s32.totalorder %s31, 1
      %p120 = por %p118, %p119
      %p122 = scmp.ne.s32.totalorder %s105, %s121
      %p123 = scmp.eq.s32.totalorder %s31, 0
      %p124 = por %p122, %p123
      %s126 = sadd.s32 %s125, 1
      %p129 = scmp.eq.s32.totalorder %s25, 1
      %p130 = scmp.ne.s32.totalorder %s125, %s127
      %p131 = scmp.eq.s32.totalorder %s25, 0
      %p132 = por %p130, %p131
      %p133 = scmp.ne.s32.totalorder %s125, %s127
      %p134 = scmp.eq.s32.totalorder %s30, 1
      %p135 = por %p133, %p134
      %p136 = scmp.ne.s32.totalorder %s127, %s128
      %p137 = scmp.eq.s32.totalorder %s30, 0
      %p138 = por %p136, %p137
      %p139 = scmp.ne.s32.totalorder %s127, %s128
      %p140 = scmp.eq.s32.totalorder %s31, 1
      %p141 = por %p139, %p140
      %p143 = scmp.ne.s32.totalorder %s128, %s142
      %p144 = scmp.eq.s32.totalorder %s31, 0
      %p145 = por %p143, %p144
      %s147 = sadd.s32 %s146, 1
      %p150 = scmp.eq.s32.totalorder %s25, 1
      %p151 = scmp.ne.s32.totalorder %s146, %s148
      %p152 = scmp.eq.s32.totalorder %s25, 0
      %p153 = por %p151, %p152
      %p154 = scmp.ne.s32.totalorder %s146, %s148
      %p155 = scmp.eq.s32.totalorder %s30, 1
      %p156 = por %p154, %p155
      %p157 = scmp.ne.s32.totalorder %s148, %s149
      %p158 = scmp.eq.s32.totalorder %s30, 0
      %p159 = por %p157, %p158
      %p160 = scmp.ne.s32.totalorder %s148, %s149
      %p161 = scmp.eq.s32.totalorder %s31, 1
      %p162 = por %p160, %p161
      %p164 = scmp.ne.s32.totalorder %s149, %s163
      %p165 = scmp.eq.s32.totalorder %s31, 0
      %p166 = por %p164, %p165
      %s168 = sadd.s32 %s167, 1
      %p171 = scmp.eq.s32.totalorder %s25, 1
      %p172 = scmp.ne.s32.totalorder %s167, %s169
      %p173 = scmp.eq.s32.totalorder %s25, 0
      %p174 = por %p172, %p173
      %p175 = scmp.ne.s32.totalorder %s167, %s169
      %p176 = scmp.eq.s32.totalorder %s30, 1
      %p177 = por %p175, %p176
      %p178 = scmp.ne.s32.totalorder %s169, %s170
      %p179 = scmp.eq.s32.totalorder %s30, 0
      %p180 = por %p178, %p179
      %p181 = scmp.ne.s32.totalorder %s169, %s170
      %p182 = scmp.eq.s32.totalorder %s31, 1
      %p183 = por %p181, %p182
      %p185 = scmp.ne.s32.totalorder %s170, %s184
      %p186 = scmp.eq.s32.totalorder %s31, 0
      %p187 = por %p185, %p186
      %s189 = sadd.s32 %s188, 1
      %p192 = scmp.eq.s32.totalorder %s25, 1
      %p193 = scmp.ne.s32.totalorder %s188, %s190
      %p194 = scmp.eq.s32.totalorder %s25, 0
      %p195 = por %p193, %p194
      %p196 = scmp.ne.s32.totalorder %s188, %s190
      %p197 = scmp.eq.s32.totalorder %s30, 1
      %p198 = por %p196, %p197
      %p199 = scmp.ne.s32.totalorder %s190, %s191
      %p200 = scmp.eq.s32.totalorder %s30, 0
      %p201 = por %p199, %p200
      %p202 = scmp.ne.s32.totalorder %s190, %s191
      %p203 = scmp.eq.s32.totalorder %s31, 1
      %p204 = por %p202, %p203
      %p206 = scmp.ne.s32.totalorder %s191, %s205
      %p207 = scmp.eq.s32.totalorder %s31, 0
      %p208 = por %p206, %p207
      %s210 = sadd.s32 %s209, 1
      %p213 = scmp.eq.s32.totalorder %s25, 1
      %p214 = scmp.ne.s32.totalorder %s209, %s211
      %p215 = scmp.eq.s32.totalorder %s25, 0
      %p216 = por %p214, %p215
      %p217 = scmp.ne.s32.totalorder %s209, %s211
      %p218 = scmp.eq.s32.totalorder %s30, 1
      %p219 = por %p217, %p218
      %p220 = scmp.ne.s32.totalorder %s211, %s212
      %p221 = scmp.eq.s32.totalorder %s30, 0
      %p222 = por %p220, %p221
      %p223 = scmp.ne.s32.totalorder %s211, %s212
      %p224 = scmp.eq.s32.totalorder %s31, 1
      %p225 = por %p223, %p224
      %p227 = scmp.ne.s32.totalorder %s212, %s226
      %p228 = scmp.eq.s32.totalorder %s31, 0
      %p229 = por %p227, %p228
      %s231 = sadd.s32 %s230, 1
      %p234 = scmp.eq.s32.totalorder %s25, 1
      %p235 = scmp.ne.s32.totalorder %s230, %s232
      %p236 = scmp.eq.s32.totalorder %s25, 0
      %p237 = por %p235, %p236
      %p238 = scmp.ne.s32.totalorder %s230, %s232
      %p239 = scmp.eq.s32.totalorder %s30, 1
      %p240 = por %p238, %p239
      %p241 = scmp.ne.s32.totalorder %s232, %s233
      %p242 = scmp.eq.s32.totalorder %s30, 0
      %p243 = por %p241, %p242
      %p244 = scmp.ne.s32.totalorder %s232, %s233
      %p245 = scmp.eq.s32.totalorder %s31, 1
      %p246 = por %p244, %p245
      %p248 = scmp.ne.s32.totalorder %s233, %s247
      %p249 = scmp.eq.s32.totalorder %s31, 0
      %p250 = por %p248, %p249
      %s252 = sadd.s32 %s251, 1
      %p255 = scmp.eq.s32.totalorder %s25, 1
      %p256 = scmp.ne.s32.totalorder %s251, %s253
      %p257 = scmp.eq.s32.totalorder %s25, 0
      %p258 = por %p256, %p257
      %p259 = scmp.ne.s32.totalorder %s251, %s253
      %p260 = scmp.eq.s32.totalorder %s30, 1
      %p261 = por %p259, %p260
      %p262 = scmp.ne.s32.totalorder %s253, %s254
      %p263 = scmp.eq.s32.totalorder %s30, 0
      %p264 = por %p262, %p263
      %p265 = scmp.ne.s32.totalorder %s253, %s254
      %p266 = scmp.eq.s32.totalorder %s31, 1
      %p267 = por %p265, %p266
      %p269 = scmp.ne.s32.totalorder %s254, %s268
      %p270 = scmp.eq.s32.totalorder %s31, 0
      %p271 = por %p269, %p270
      %s273 = sadd.s32 %s272, 1
      %p276 = scmp.eq.s32.totalorder %s25, 1
      %p277 = scmp.ne.s32.totalorder %s272, %s274
      %p278 = scmp.eq.s32.totalorder %s25, 0
      %p279 = por %p277, %p278
      %p280 = scmp.ne.s32.totalorder %s272, %s274
      %p281 = scmp.eq.s32.totalorder %s30, 1
      %p282 = por %p280, %p281
      %p283 = scmp.ne.s32.totalorder %s274, %s275
      %p284 = scmp.eq.s32.totalorder %s30, 0
      %p285 = por %p283, %p284
      %p286 = scmp.ne.s32.totalorder %s274, %s275
      %p287 = scmp.eq.s32.totalorder %s31, 1
      %p288 = por %p286, %p287
      %p290 = scmp.ne.s32.totalorder %s275, %s289
      %p291 = scmp.eq.s32.totalorder %s31, 0
      %p292 = por %p290, %p291
      %s293 = ssub.s32 %s32, %s44
      %s294 = ssub.s32 %s33, %s40
      %s295 = sor.u32 %s293, %s294
      %p296 = scmp.eq.s32.totalorder %s295, 0
      %s298 = sadd.s32 %s297, 1
      %s299 = scalar_select %p296, %s297, %s298
      %p302 = pneg %p296
      %p303 = scmp.eq.s32.totalorder %s25, 1
      %p304 = por %p302, %p303
      %p305 = scmp.ne.s32.totalorder %s297, %s300
      %p306 = scmp.eq.s32.totalorder %s25, 0
      %p307 = por %p305, %p306
      %p308 = scmp.ne.s32.totalorder %s297, %s300
      %p309 = scmp.eq.s32.totalorder %s30, 1
      %p310 = por %p308, %p309
      %p311 = scmp.ne.s32.totalorder %s300, %s301
      %p312 = scmp.eq.s32.totalorder %s30, 0
      %p313 = por %p311, %p312
      %p314 = scmp.ne.s32.totalorder %s300, %s301
      %p315 = scmp.eq.s32.totalorder %s31, 1
      %p316 = por %p314, %p315
      %p318 = scmp.ne.s32.totalorder %s301, %s317
      %p319 = scmp.eq.s32.totalorder %s31, 0
      %p320 = por %p318, %p319
      %s321 = ssub.s32 %s32, %s44
      %s322 = ssub.s32 %s33, %s40
      %s323 = sor.u32 %s321, %s322
      %p324 = scmp.eq.s32.totalorder %s323, 0
      %s326 = sadd.s32 %s325, 1
      %s327 = scalar_select %p324, %s325, %s326
      %p330 = pneg %p324
      %p331 = scmp.eq.s32.totalorder %s25, 1
      %p332 = por %p330, %p331
      %p333 = scmp.ne.s32.totalorder %s325, %s328
      %p334 = scmp.eq.s32.totalorder %s25, 0
      %p335 = por %p333, %p334
      %p336 = scmp.ne.s32.totalorder %s325, %s328
      %p337 = scmp.eq.s32.totalorder %s30, 1
      %p338 = por %p336, %p337
      %p339 = scmp.ne.s32.totalorder %s328, %s329
      %p340 = scmp.eq.s32.totalorder %s30, 0
      %p341 = por %p339, %p340
      %p342 = scmp.ne.s32.totalorder %s328, %s329
      %p343 = scmp.eq.s32.totalorder %s31, 1
      %p344 = por %p342, %p343
      %p346 = scmp.ne.s32.totalorder %s329, %s345
      %p347 = scmp.eq.s32.totalorder %s31, 0
      %p348 = por %p346, %p347
      %p349 = scmp.le.s32.totalorder 1, %s25
      %p350 = scmp.lt.s32.totalorder %s25, 3
      %p351 = pnand %p349, %p350
      %p352 = pneg %p351
      // Predicated region
      $region9: #{multi_head_attention.1} parent=5 // pred_check
        _
      $region10: #{multi_head_attention.1} parent=5 // pred_check_branch
        %354 = sbr.rel (%p351) target = $region12
      $region11: #{multi_head_attention.1} parent=5 // pred_region
        %s355 = ssub.s32 %s25, 1
        // Predicated region
        $region13: #{multi_head_attention.1} parent=11 // pred_check
          %p356 = pneg %p138
        $region14: #{multi_head_attention.1} parent=11 // pred_check_branch
          %358 = sbr.rel (%p356) target = $region16
        $region15: #{multi_head_attention.1} parent=11 // pred_region
          _
        $region16: #{multi_head_attention.1} parent=11 // pred_fallthru
          _
        // Predicated region
        $region17: #{multi_head_attention.1} parent=11 // pred_check
          %p359 = pneg %p159
        $region18: #{multi_head_attention.1} parent=11 // pred_check_branch
          %361 = sbr.rel (%p359) target = $region20
        $region19: #{multi_head_attention.1} parent=11 // pred_region
          _
        $region20: #{multi_head_attention.1} parent=11 // pred_fallthru
          _
        // Predicated region
        $region21: #{multi_head_attention.1} parent=11 // pred_check
          %p362 = pneg %p180
        $region22: #{multi_head_attention.1} parent=11 // pred_check_branch
          %364 = sbr.rel (%p362) target = $region24
        $region23: #{multi_head_attention.1} parent=11 // pred_region
          _
        $region24: #{multi_head_attention.1} parent=11 // pred_fallthru
          _
        // Predicated region
        $region25: #{multi_head_attention.1} parent=11 // pred_check
          %p365 = pneg %p201
        $region26: #{multi_head_attention.1} parent=11 // pred_check_branch
          %367 = sbr.rel (%p365) target = $region28
        $region27: #{multi_head_attention.1} parent=11 // pred_region
          _
        $region28: #{multi_head_attention.1} parent=11 // pred_fallthru
          _
        // Predicated region
        $region29: #{multi_head_attention.1} parent=11 // pred_check
          %p368 = pneg %p222
        $region30: #{multi_head_attention.1} parent=11 // pred_check_branch
          %370 = sbr.rel (%p368) target = $region32
        $region31: #{multi_head_attention.1} parent=11 // pred_region
          _
        $region32: #{multi_head_attention.1} parent=11 // pred_fallthru
          _
        // Predicated region
        $region33: #{multi_head_attention.1} parent=11 // pred_check
          %p371 = pneg %p243
        $region34: #{multi_head_attention.1} parent=11 // pred_check_branch
          %373 = sbr.rel (%p371) target = $region36
        $region35: #{multi_head_attention.1} parent=11 // pred_region
          _
        $region36: #{multi_head_attention.1} parent=11 // pred_fallthru
          _
        // Predicated region
        $region37: #{multi_head_attention.1} parent=11 // pred_check
          %p374 = pneg %p264
        $region38: #{multi_head_attention.1} parent=11 // pred_check_branch
          %376 = sbr.rel (%p374) target = $region40
        $region39: #{multi_head_attention.1} parent=11 // pred_region
          _
        $region40: #{multi_head_attention.1} parent=11 // pred_fallthru
          _
        // Predicated region
        $region41: #{multi_head_attention.1} parent=11 // pred_check
          %p377 = pneg %p285
        $region42: #{multi_head_attention.1} parent=11 // pred_check_branch
          %379 = sbr.rel (%p377) target = $region44
        $region43: #{multi_head_attention.1} parent=11 // pred_region
          _
        $region44: #{multi_head_attention.1} parent=11 // pred_fallthru
          _
      $region12: #{multi_head_attention.1} parent=5 // pred_fallthru
        _
      %p380 = scmp.lt.s32.totalorder %s25, 2
      // Predicated region
      $region45: #{multi_head_attention.1} parent=5 // pred_check
        %p381 = pneg %p380
      $region46: #{multi_head_attention.1} parent=5 // pred_check_branch
        %383 = sbr.rel (%p381) target = $region48
      $region47: #{multi_head_attention.1} parent=5 // pred_region
        // Predicated region
        $region49: #{multi_head_attention.1} parent=47 // pred_check
          %p384 = pneg %p59
        $region50: #{multi_head_attention.1} parent=47 // pred_check_branch
          %386 = sbr.rel (%p384) target = $region52
        $region51: #{multi_head_attention.1} parent=47 // pred_region
          %p387 = scmp.lt.s32.totalorder %s32, 1
          %s388 = scalar_select %p387, %s32, 1
          %p389 = scmp.lt.s32.totalorder %s33, 0
          %s390 = scalar_select %p389, %s33, 0
          %s391 = sadd.s32 %s390, %s388
          %s392 = smul.addr %s391, 8
          %s393 = scalar_lea.vmem %s0, %s392
        $region52: #{multi_head_attention.1} parent=47 // pred_fallthru
          _
        // Predicated region
        $region53: #{multi_head_attention.1} parent=47 // pred_check
          %p394 = pneg %p85
        $region54: #{multi_head_attention.1} parent=47 // pred_check_branch
          %396 = sbr.rel (%p394) target = $region56
        $region55: #{multi_head_attention.1} parent=47 // pred_region
          %p397 = scmp.lt.s32.totalorder %s32, 1
          %s398 = scalar_select %p397, %s32, 1
          %s399 = smul.addr %s398, 8
          %s400 = scalar_lea.vmem %s1, %s399
        $region56: #{multi_head_attention.1} parent=47 // pred_fallthru
          _
        // Predicated region
        $region57: #{multi_head_attention.1} parent=47 // pred_check
          %p401 = pneg %p111
        $region58: #{multi_head_attention.1} parent=47 // pred_check_branch
          %403 = sbr.rel (%p401) target = $region60
        $region59: #{multi_head_attention.1} parent=47 // pred_region
          %p404 = scmp.lt.s32.totalorder %s32, 1
          %s405 = scalar_select %p404, %s32, 1
          %s406 = smul.addr %s405, 8
          %s407 = scalar_lea.vmem %s2, %s406
        $region60: #{multi_head_attention.1} parent=47 // pred_fallthru
          _
      $region48: #{multi_head_attention.1} parent=5 // pred_fallthru
        _
      %p408 = scmp.le.s32.totalorder 1, %s25
      %p409 = scmp.lt.s32.totalorder %s25, 3
      %p410 = pnand %p408, %p409
      %p411 = pneg %p410
      // Predicated region
      $region61: #{multi_head_attention.1} parent=5 // pred_check
        _
      $region62: #{multi_head_attention.1} parent=5 // pred_check_branch
        %413 = sbr.rel (%p410) target = $region64
      $region63: #{multi_head_attention.1} parent=5 // pred_region
        %s414 = ssub.s32 %s25, 1
        %p415 = scmp.lt.s32.totalorder %s34, 1
        %s416 = scalar_select %p415, %s34, 1
        %p417 = scmp.lt.s32.totalorder %s35, 0
        %s418 = scalar_select %p417, %s35, 0
        %s419 = sadd.s32 %s418, %s416
        %s420 = smul.addr %s419, 8
        %s421 = scalar_lea.vmem %s0, %s420
        %p422 = pneg %p65
        %p423 = pneg %p62
        %p424 = scmp.lt.s32.totalorder %s34, 1
        %s425 = scalar_select %p424, %s34, 1
        %s426 = smul.addr %s425, 8
        %s427 = scalar_lea.vmem %s1, %s426
        %p428 = pneg %p91
        %p429 = pneg %p88
        %p430 = scmp.lt.s32.totalorder %s34, 1
        %s431 = scalar_select %p430, %s34, 1
        %s432 = smul.addr %s431, 8
        %s433 = scalar_lea.vmem %s2, %s432
        %p434 = pneg %p117
        %p435 = pneg %p114
        %p436 = pneg %p138
        %p437 = pneg %p135
        %p438 = pneg %p159
        %p439 = pneg %p156
        %p440 = pneg %p180
        %p441 = pneg %p177
        %p442 = pneg %p201
        %p443 = pneg %p198
        %p444 = pneg %p222
        %p445 = pneg %p219
        %p446 = pneg %p243
        %p447 = pneg %p240
        %p448 = pneg %p264
        %p449 = pneg %p261
        %p450 = pneg %p285
        %p451 = pneg %p282
        %p452 = pneg %p313
        %p453 = pneg %p310
        %s454 = sand.u32 %s300, 1
        %s455 = scalar_lea.sflag [#allocation5], %s454
        %s456 = sand.u32 %s300, 1
        %s457 = smul.addr %s456, 8
        %s458 = scalar_lea.vmem [#allocation4], %s457
        %p459 = pneg %p341
        %p460 = pneg %p338
        %s461 = sand.u32 %s328, 1
        %s462 = scalar_lea.sflag [#allocation7], %s461
        %s463 = sand.u32 %s328, 1
        %s464 = smul.addr %s463, 32
        %s465 = scalar_lea.vmem [#allocation6], %s464
        %p466 = scmp.lt.s32.totalorder %s34, 1
        %s467 = scalar_select %p466, %s34, 1
        %p468 = scmp.lt.s32.totalorder %s35, 0
        %s469 = scalar_select %p468, %s35, 0
        %s470 = sadd.s32 %s469, %s467
        %s471 = smul.addr %s470, 8
        %s472 = scalar_lea.vmem %s0, %s471
        %p473 = scmp.lt.s32.totalorder %s34, 1
        %s474 = scalar_select %p473, %s34, 1
        %s475 = smul.addr %s474, 8
        %s476 = scalar_lea.vmem %s1, %s475
        %p477 = scmp.lt.s32.totalorder %s34, 1
        %s478 = scalar_select %p477, %s34, 1
        %s479 = smul.addr %s478, 8
        %s480 = scalar_lea.vmem %s2, %s479
        %p482 = scmp.eq.s32.totalorder %s35, 0
        // Predicated region
        $region65: #{multi_head_attention.1} parent=63 // pred_check
          %p483 = pneg %p482
        $region66: #{multi_head_attention.1} parent=63 // pred_check_branch
          %485 = sbr.rel (%p483) target = $region68
        $region67: #{multi_head_attention.1} parent=63 // pred_region
          %v486 = vld [vmem:[%s476] sm:$0xff]
          %v487 = vpack.c.bf16 %v486, %v486
          %v488 = vld [vmem:[%s480] sm:$0xff]
          %v489 = vpack.c.bf16 %v488, %v488
          %v490 = vld [vmem:[%s4] sm:$0xf]
          %v491 = vld [vmem:[%s4 + $0x4] sm:$0xf]
          %v492 = vld [vmem:[%s4 + $0x8] sm:$0xf]
          %v493 = vld [vmem:[%s4 + $0xc] sm:$0xf]
          %v494 = vld [vmem:[%s8] sm:$0x1]
          %v496 = vperm.slane %v494, 0
          %v502 = vunpack.c.l.b16 %v490
          %v503 = vunpack.c.l.b16 %v491
          %v504 = vunpack.c.l.b16 %v492
          %v505 = vunpack.c.l.b16 %v493
          %v506 = vpack.c.b16 %v503, %v502
          %v507 = vpack.c.b16 %v505, %v504
          %vm510 = vcmask 261120
          %v512 = vsel %vm510, %v487, 0
          %514 = vmatpush.bf16.msra.mxu0 0
          %515 = vmatpush.bf16.msra.mxu0 0
          %516 = vmatpush.bf16.msra.mxu0 0
          %517 = vmatpush.bf16.msra.mxu0 0
          %518 = vmatpush.bf16.msra.mxu0 0
          %519 = vmatpush.bf16.msra.mxu0 0
          %520 = vmatpush.bf16.msra.mxu0 %v507
          %521 = vmatpush.bf16.msra.mxu0 %v506
          %522 = vmatmul.bf16.gmra.mxu0 %v512
          %v523 = vpop.f32.mrf.mxu0
          %v524 = vadd.f32 %v496, %v523
          %v525 = vpop.f32.mrf.mxu0
          %526 = vdwg.mxu0
          %v527 = vld [vmem:[%s5] sm:$0xf]
          %v528 = vld [vmem:[%s5 + $0x4] sm:$0xf]
          %v529 = vld [vmem:[%s5 + $0x8] sm:$0xf]
          %v530 = vld [vmem:[%s5 + $0xc] sm:$0xf]
          %v531 = vld [vmem:[%s9] sm:$0x1]
          %v533 = vperm.slane %v531, 0
          %v539 = vunpack.c.l.b16 %v527
          %v540 = vunpack.c.l.b16 %v528
          %v541 = vunpack.c.l.b16 %v529
          %v542 = vunpack.c.l.b16 %v530
          %v543 = vpack.c.b16 %v540, %v539
          %v544 = vpack.c.b16 %v542, %v541
          %v548 = vsel %vm510, %v489, 0
          %550 = vmatpush.bf16.msra.mxu0 0
          %551 = vmatpush.bf16.msra.mxu0 0
          %552 = vmatpush.bf16.msra.mxu0 0
          %553 = vmatpush.bf16.msra.mxu0 0
          %554 = vmatpush.bf16.msra.mxu0 0
          %555 = vmatpush.bf16.msra.mxu0 0
          %556 = vmatpush.bf16.msra.mxu0 %v544
          %557 = vmatpush.bf16.msra.mxu0 %v543
          %558 = vmatmul.bf16.gmra.mxu0 %v548
          %v559 = vpop.f32.mrf.mxu0
          %v560 = vadd.f32 %v533, %v559
          %v561 = vpop.f32.mrf.mxu0
          %562 = vdwg.mxu0
          %v563 = vpack.c.bf16 %v524, %v524
          %vm564 = vcmask 257024
          %565 = vst.msk [vmem:[#allocation2] sm:$0xf] %vm564, %v563
          %v566 = vpack.c.bf16 %v560, %v560
          %567 = vst.msk [vmem:[#allocation3] sm:$0xf] %vm564, %v566
        $region68: #{multi_head_attention.1} parent=63 // pred_fallthru
          _
        %v568 = vld [vmem:[%s472] sm:$0xff]
        %v569 = vpack.c.bf16 %v568, %v568
        %v570 = vld [vmem:[%s3] sm:$0xf]
        %v571 = vld [vmem:[%s3 + $0x4] sm:$0xf]
        %v572 = vld [vmem:[%s3 + $0x8] sm:$0xf]
        %v573 = vld [vmem:[%s3 + $0xc] sm:$0xf]
        %v574 = vld [vmem:[%s7] sm:$0x1]
        %v576 = vperm.slane %v574, 0
        %v582 = vunpack.c.l.b16 %v570
        %v583 = vunpack.c.l.b16 %v571
        %v584 = vunpack.c.l.b16 %v572
        %v585 = vunpack.c.l.b16 %v573
        %v586 = vpack.c.b16 %v583, %v582
        %v587 = vpack.c.b16 %v585, %v584
        %vm590 = vcmask 261120
        %v592 = vsel %vm590, %v569, 0
        %594 = vmatpush.bf16.msra.mxu0 0
        %595 = vmatpush.bf16.msra.mxu0 0
        %596 = vmatpush.bf16.msra.mxu0 0
        %597 = vmatpush.bf16.msra.mxu0 0
        %598 = vmatpush.bf16.msra.mxu0 0
        %599 = vmatpush.bf16.msra.mxu0 0
        %600 = vmatpush.bf16.msra.mxu0 %v587
        %601 = vmatpush.bf16.msra.mxu0 %v586
        %602 = vmatmul.bf16.gmra.mxu0 %v592
        %v603 = vpop.f32.mrf.mxu0
        %v604 = vadd.f32 %v576, %v603
        %v605 = vpop.f32.mrf.mxu0
        %606 = vdwg.mxu0
        %v607 = vpack.c.bf16 %v604, %v604
        %v608 = vld [vmem:[#allocation2] sm:$0xf]
        %v609 = vld [vmem:[#allocation3] sm:$0xf]
        %vm610 = vcmask 64512
        %v612 = vsel %vm610, %v607, 0
        %v615 = vsel %vm610, %v608, 0
        %617 = vmatpush.bf16.xpose.msra.mxu0 0
        %618 = vmatpush.bf16.xpose.msra.mxu0 0
        %619 = vmatpush.bf16.xpose.msra.mxu0 0
        %620 = vmatpush.bf16.xpose.msra.mxu0 0
        %621 = vmatpush.bf16.xpose.msra.mxu0 0
        %622 = vmatpush.bf16.xpose.msra.mxu0 0
        %623 = vmatpush.bf16.xpose.msra.mxu0 0
        %624 = vmatpush.bf16.xpose.msra.mxu0 %v615
        %625 = vmatmul.bf16.gmra.mxu0 %v612
        %v626 = vpop.f32.mrf.mxu0
        %v627 = vadd.f32 0.0, %v626
        %v628 = vpop.f32.mrf.mxu0
        %629 = vdwg.mxu0
        %v630 = vsel %vm610, %v627, -inf
        %631 = vmax.xlane.f32.xlu0 %v630
        %v632 = vpop.xlane.xlu0 %631
        %v633 = vsub.f32 %v627, %v632
        %v634 = vmul.f32 %v633, 1.442695
        %v635 = vpow.pop %v634
        %v636 = vsel %vm610, %v635, 0.0
        %637 = vadd.xlane.f32.xlu0 %v636
        %v638 = vpop.xlane.xlu0 %637
        %v639 = vrcp.pop %v638
        %v640 = vmul.f32 %v635, %v639
        %641 = vst.msk [vmem:[%s465] sm:$0xff] %vm610, %v640
        %v642 = vpack.c.bf16 %v640, %v640
        %v644 = vsel %vm610, %v642, 0
        %vm646 = vcmask 1043456
        %v648 = vsel %vm646, %v609, 0
        %650 = vmatpush.bf16.msra.mxu0 0
        %651 = vmatpush.bf16.msra.mxu0 0
        %652 = vmatpush.bf16.msra.mxu0 0
        %653 = vmatpush.bf16.msra.mxu0 0
        %654 = vmatpush.bf16.msra.mxu0 0
        %655 = vmatpush.bf16.msra.mxu0 0
        %656 = vmatpush.bf16.msra.mxu0 0
        %657 = vmatpush.bf16.msra.mxu0 %v648
        %658 = vmatmul.bf16.gmra.mxu0 %v644
        %v659 = vpop.f32.mrf.mxu0
        %v660 = vadd.f32 0.0, %v659
        %v661 = vpop.f32.mrf.mxu0
        %662 = vdwg.mxu0
        %v664 = vunpack.c.l.b16 %v607
        %v665 = vpack.c.b16 %v664, %v664
        %666 = vrot.lane.b32.xlu0 %v665, 120
        %v667 = vpop.permute.xlu0 %666
        %v669 = vunpack.c.l.b16 %v608
        %v670 = vpack.c.b16 %v669, %v669
        %671 = vrot.lane.b32.xlu0 %v670, 120
        %v672 = vpop.permute.xlu0 %671
        %v674 = vsel %vm610, %v667, 0
        %v677 = vsel %vm610, %v672, 0
        %679 = vmatpush.bf16.xpose.msra.mxu0 0
        %680 = vmatpush.bf16.xpose.msra.mxu0 0
        %681 = vmatpush.bf16.xpose.msra.mxu0 0
        %682 = vmatpush.bf16.xpose.msra.mxu0 0
        %683 = vmatpush.bf16.xpose.msra.mxu0 0
        %684 = vmatpush.bf16.xpose.msra.mxu0 0
        %685 = vmatpush.bf16.xpose.msra.mxu0 0
        %686 = vmatpush.bf16.xpose.msra.mxu0 %v677
        %687 = vmatmul.bf16.gmra.mxu0 %v674
        %v688 = vpop.f32.mrf.mxu0
        %v689 = vadd.f32 0.0, %v688
        %v690 = vpop.f32.mrf.mxu0
        %691 = vdwg.mxu0
        %v692 = vsel %vm610, %v689, -inf
        %693 = vmax.xlane.f32.xlu0 %v692
        %v694 = vpop.xlane.xlu0 %693
        %v695 = vsub.f32 %v689, %v694
        %v696 = vmul.f32 %v695, 1.442695
        %v697 = vpow.pop %v696
        %v698 = vsel %vm610, %v697, 0.0
        %699 = vadd.xlane.f32.xlu0 %v698
        %v700 = vpop.xlane.xlu0 %699
        %v701 = vrcp.pop %v700
        %v702 = vmul.f32 %v697, %v701
        %s703 = scalar_lea.vmem %s465, 8 [#allocation6]
        %704 = vst.msk [vmem:[%s703] sm:$0xff] %vm610, %v702
        %v705 = vpack.c.bf16 %v702, %v702
        %v707 = vunpack.c.l.b16 %v609
        %v708 = vpack.c.b16 %v707, %v707
        %709 = vrot.lane.b32.xlu0 %v708, 120
        %v710 = vpop.permute.xlu0 %709
        %v712 = vsel %vm610, %v705, 0
        %v715 = vsel %vm646, %v710, 0
        %717 = vmatpush.bf16.msra.mxu0 0
        %718 = vmatpush.bf16.msra.mxu0 0
        %719 = vmatpush.bf16.msra.mxu0 0
        %720 = vmatpush.bf16.msra.mxu0 0
        %721 = vmatpush.bf16.msra.mxu0 0
        %722 = vmatpush.bf16.msra.mxu0 0
        %723 = vmatpush.bf16.msra.mxu0 0
        %724 = vmatpush.bf16.msra.mxu0 %v715
        %725 = vmatmul.bf16.gmra.mxu0 %v712
        %v726 = vpop.f32.mrf.mxu0
        %v727 = vadd.f32 0.0, %v726
        %v728 = vpop.f32.mrf.mxu0
        %729 = vdwg.mxu0
        %730 = vrot.lane.b32.xlu0 %v665, 112
        %v731 = vpop.permute.xlu0 %730
        %732 = vrot.lane.b32.xlu0 %v670, 112
        %v733 = vpop.permute.xlu0 %732
        %v735 = vsel %vm610, %v731, 0
        %v738 = vsel %vm610, %v733, 0
        %740 = vmatpush.bf16.xpose.msra.mxu0 0
        %741 = vmatpush.bf16.xpose.msra.mxu0 0
        %742 = vmatpush.bf16.xpose.msra.mxu0 0
        %743 = vmatpush.bf16.xpose.msra.mxu0 0
        %744 = vmatpush.bf16.xpose.msra.mxu0 0
        %745 = vmatpush.bf16.xpose.msra.mxu0 0
        %746 = vmatpush.bf16.xpose.msra.mxu0 0
        %747 = vmatpush.bf16.xpose.msra.mxu0 %v738
        %748 = vmatmul.bf16.gmra.mxu0 %v735
        %v749 = vpop.f32.mrf.mxu0
        %v750 = vadd.f32 0.0, %v749
        %v751 = vpop.f32.mrf.mxu0
        %752 = vdwg.mxu0
        %v753 = vsel %vm610, %v750, -inf
        %754 = vmax.xlane.f32.xlu0 %v753
        %v755 = vpop.xlane.xlu0 %754
        %v756 = vsub.f32 %v750, %v755
        %v757 = vmul.f32 %v756, 1.442695
        %v758 = vpow.pop %v757
        %v759 = vsel %vm610, %v758, 0.0
        %760 = vadd.xlane.f32.xlu0 %v759
        %v761 = vpop.xlane.xlu0 %760
        %v762 = vrcp.pop %v761
        %v763 = vmul.f32 %v758, %v762
        %s764 = scalar_lea.vmem %s465, 16 [#allocation6]
        %765 = vst.msk [vmem:[%s764] sm:$0xff] %vm610, %v763
        %v766 = vpack.c.bf16 %v763, %v763
        %767 = vrot.lane.b32.xlu0 %v708, 112
        %v768 = vpop.permute.xlu0 %767
        %v770 = vsel %vm610, %v766, 0
        %v773 = vsel %vm646, %v768, 0
        %775 = vmatpush.bf16.msra.mxu0 0
        %776 = vmatpush.bf16.msra.mxu0 0
        %777 = vmatpush.bf16.msra.mxu0 0
        %778 = vmatpush.bf16.msra.mxu0 0
        %779 = vmatpush.bf16.msra.mxu0 0
        %780 = vmatpush.bf16.msra.mxu0 0
        %781 = vmatpush.bf16.msra.mxu0 0
        %782 = vmatpush.bf16.msra.mxu0 %v773
        %783 = vmatmul.bf16.gmra.mxu0 %v770
        %v784 = vpop.f32.mrf.mxu0
        %v785 = vadd.f32 0.0, %v784
        %v786 = vpop.f32.mrf.mxu0
        %787 = vdwg.mxu0
        %788 = vrot.lane.b32.xlu0 %v665, 104
        %v789 = vpop.permute.xlu0 %788
        %790 = vrot.lane.b32.xlu0 %v670, 104
        %v791 = vpop.permute.xlu0 %790
        %v793 = vsel %vm610, %v789, 0
        %v796 = vsel %vm610, %v791, 0
        %798 = vmatpush.bf16.xpose.msra.mxu0 0
        %799 = vmatpush.bf16.xpose.msra.mxu0 0
        %800 = vmatpush.bf16.xpose.msra.mxu0 0
        %801 = vmatpush.bf16.xpose.msra.mxu0 0
        %802 = vmatpush.bf16.xpose.msra.mxu0 0
        %803 = vmatpush.bf16.xpose.msra.mxu0 0
        %804 = vmatpush.bf16.xpose.msra.mxu0 0
        %805 = vmatpush.bf16.xpose.msra.mxu0 %v796
        %806 = vmatmul.bf16.gmra.mxu0 %v793
        %v807 = vpop.f32.mrf.mxu0
        %v808 = vadd.f32 0.0, %v807
        %v809 = vpop.f32.mrf.mxu0
        %810 = vdwg.mxu0
        %v811 = vsel %vm610, %v808, -inf
        %812 = vmax.xlane.f32.xlu0 %v811
        %v813 = vpop.xlane.xlu0 %812
        %v814 = vsub.f32 %v808, %v813
        %v815 = vmul.f32 %v814, 1.442695
        %v816 = vpow.pop %v815
        %v817 = vsel %vm610, %v816, 0.0
        %818 = vadd.xlane.f32.xlu0 %v817
        %v819 = vpop.xlane.xlu0 %818
        %v820 = vrcp.pop %v819
        %v821 = vmul.f32 %v816, %v820
        %s822 = scalar_lea.vmem %s465, 24 [#allocation6]
        %823 = vst.msk [vmem:[%s822] sm:$0xff] %vm610, %v821
        %v824 = vpack.c.bf16 %v821, %v821
        %825 = vrot.lane.b32.xlu0 %v708, 104
        %v826 = vpop.permute.xlu0 %825
        %v828 = vsel %vm610, %v824, 0
        %v831 = vsel %vm646, %v826, 0
        %833 = vmatpush.bf16.msra.mxu0 0
        %834 = vmatpush.bf16.msra.mxu0 0
        %835 = vmatpush.bf16.msra.mxu0 0
        %836 = vmatpush.bf16.msra.mxu0 0
        %837 = vmatpush.bf16.msra.mxu0 0
        %838 = vmatpush.bf16.msra.mxu0 0
        %839 = vmatpush.bf16.msra.mxu0 0
        %840 = vmatpush.bf16.msra.mxu0 %v831
        %841 = vmatmul.bf16.gmra.mxu0 %v828
        %v842 = vpop.f32.mrf.mxu0
        %v843 = vadd.f32 0.0, %v842
        %v844 = vpop.f32.mrf.mxu0
        %845 = vdwg.mxu0
        %847 = vrot.lane.b32.xlu0 %v727, 8
        %v848 = vpop.permute.xlu0 %847
        %851 = vrot.lane.b32.xlu0 %v785, 16
        %v852 = vpop.permute.xlu0 %851
        %855 = vrot.lane.b32.xlu0 %v843, 24
        %v856 = vpop.permute.xlu0 %855
        %v858 = vsel %vm610, %v660, %v848
        %vm859 = vcmask 130048
        %v860 = vsel %vm859, %v858, %v852
        %vm861 = vcmask 195584
        %v862 = vsel %vm861, %v860, %v856
        %v863 = vpack.c.bf16 %v862, %v862
        %v864 = vld [vmem:[%s6] sm:$0xf]
        %v865 = vld [vmem:[%s6 + $0x4] sm:$0xf]
        %v866 = vld [vmem:[%s6 + $0x8] sm:$0xf]
        %v867 = vld [vmem:[%s6 + $0xc] sm:$0xf]
        %v868 = vld [vmem:[%s10] sm:$0x1]
        %v870 = vperm.slane %v868, 0
        %v876 = vunpack.c.l.b16 %v864
        %v877 = vunpack.c.l.b16 %v865
        %v878 = vunpack.c.l.b16 %v866
        %v879 = vunpack.c.l.b16 %v867
        %v880 = vpack.c.b16 %v877, %v876
        %v881 = vpack.c.b16 %v879, %v878
        %v885 = vsel %vm590, %v863, 0
        %887 = vmatpush.bf16.msra.mxu0 0
        %888 = vmatpush.bf16.msra.mxu0 0
        %889 = vmatpush.bf16.msra.mxu0 0
        %890 = vmatpush.bf16.msra.mxu0 0
        %891 = vmatpush.bf16.msra.mxu0 0
        %892 = vmatpush.bf16.msra.mxu0 0
        %893 = vmatpush.bf16.msra.mxu0 %v881
        %894 = vmatpush.bf16.msra.mxu0 %v880
        %895 = vmatmul.bf16.gmra.mxu0 %v885
        %v896 = vpop.f32.mrf.mxu0
        %v897 = vadd.f32 %v870, %v896
        %v898 = vpop.f32.mrf.mxu0
        %899 = vdwg.mxu0
        %900 = vst.msk [vmem:[%s458] sm:$0xff] %vm590, %v897
        %s901 = sand.u32 %s300, 1
        %s902 = scalar_lea.sflag [#allocation5], %s901
        %s903 = sand.u32 %s300, 1
        %s904 = smul.addr %s903, 8
        %s905 = scalar_lea.vmem [#allocation4], %s904
        %s906 = sand.u32 %s328, 1
        %s907 = scalar_lea.sflag [#allocation7], %s906
        %s908 = sand.u32 %s328, 1
        %s909 = smul.addr %s908, 32
        %s910 = scalar_lea.vmem [#allocation6], %s909
        // Predicated region
        $region69: #{multi_head_attention.1} parent=63 // pred_check
          %p911 = pneg %p310
        $region70: #{multi_head_attention.1} parent=63 // pred_check_branch
          %913 = sbr.rel (%p911) target = $region72
        $region71: #{multi_head_attention.1} parent=63 // pred_region
          %915 = vsyncadd %s902, 0
          %s916 = sadd.s32 %s35, %s34
          %s917 = smul.addr %s916, 8
          %s918 = scalar_lea.hbm %s11, %s917
          %s920 = sshll.u32 %s905, 4
          %s921 = int_to_ptr.vmem [resolvable:$true] %s920
          %s922 = sshll.u32 %s918, 4
          %s923 = int_to_ptr.hbm [resolvable:$true] %s922
          %925 = dma.vmem_to_hbm [thread:$0]  %s921, 128, %s923, %s902
        $region72: #{multi_head_attention.1} parent=63 // pred_fallthru
          _
        // Predicated region
        $region73: #{multi_head_attention.1} parent=63 // pred_check
          %p926 = pneg %p338
        $region74: #{multi_head_attention.1} parent=63 // pred_check_branch
          %928 = sbr.rel (%p926) target = $region76
        $region75: #{multi_head_attention.1} parent=63 // pred_region
          %930 = vsyncadd %s907, 0
          %s931 = smul.addr %s34, 4
          %s932 = sadd.s32 %s35, %s931
          %s933 = smul.addr %s932, 8
          %s934 = scalar_lea.hbm %s12, %s933
          %s935 = sshll.u32 %s910, 4
          %s936 = int_to_ptr.vmem [resolvable:$true] %s935
          %s937 = sshll.u32 %s934, 4
          %s938 = int_to_ptr.hbm [resolvable:$true] %s937
          %943 = dma.vmem_to_hbm [thread:$0]  %s936, 512, %s938, %s907, 128, 128, 8
        $region76: #{multi_head_attention.1} parent=63 // pred_fallthru
          _
      $region64: #{multi_head_attention.1} parent=5 // pred_fallthru
        _
      %p944 = scmp.le.s32.totalorder 2, %s25
      // Predicated region
      $region77: #{multi_head_attention.1} parent=5 // pred_check
        %p945 = pneg %p944
      $region78: #{multi_head_attention.1} parent=5 // pred_check_branch
        %947 = sbr.rel (%p945) target = $region80
      $region79: #{multi_head_attention.1} parent=5 // pred_region
        %s948 = ssub.s32 %s25, 2
        // Predicated region
        $region81: #{multi_head_attention.1} parent=79 // pred_check
          %p949 = pneg %p316
        $region82: #{multi_head_attention.1} parent=79 // pred_check_branch
          %951 = sbr.rel (%p949) target = $region84
        $region83: #{multi_head_attention.1} parent=79 // pred_region
          %s952 = sand.u32 %s301, 1
          %s953 = scalar_lea.sflag [#allocation5], %s952
          %s954 = sand.u32 %s301, 1
          %s955 = smul.addr %s954, 8
          %s956 = scalar_lea.vmem [#allocation4], %s955
          %958 = dma.done %s953, 128
        $region84: #{multi_head_attention.1} parent=79 // pred_fallthru
          _
        // Predicated region
        $region85: #{multi_head_attention.1} parent=79 // pred_check
          %p959 = pneg %p344
        $region86: #{multi_head_attention.1} parent=79 // pred_check_branch
          %961 = sbr.rel (%p959) target = $region88
        $region87: #{multi_head_attention.1} parent=79 // pred_region
          %s962 = sand.u32 %s329, 1
          %s963 = scalar_lea.sflag [#allocation7], %s962
          %s964 = sand.u32 %s329, 1
          %s965 = smul.addr %s964, 32
          %s966 = scalar_lea.vmem [#allocation6], %s965
          %968 = dma.done %s963, 512
        $region88: #{multi_head_attention.1} parent=79 // pred_fallthru
          _
      $region80: #{multi_head_attention.1} parent=5 // pred_fallthru
        _
    $region6: #{multi_head_attention.1} parent=1 // loop_footer
      %s29 = sadd.s32 1, %s25
    $region7: #{multi_head_attention.1} parent=1 // loop_footer_branch
      %24 = sbr.rel target = $region3
    $region8: #{multi_head_attention.1} parent=1 // loop_exit
      _
    %969 = vsyncpa [#allocation5], 1
    %s970 = scalar_lea.sflag [#allocation5], 1
    %971 = vsyncpa %s970, 1
    %972 = vsyncpa [#allocation7], 1
    %s973 = scalar_lea.sflag [#allocation7], 1
    %974 = vsyncpa %s973, 1

</llo_original>
